<compile_context>
chip_gen: v5e
topology: v5e:2x2
jax: 0.10.0
libtpu: 0.0.40
codegen_flags: <defaults>
</compile_context>

<pallas_src>
import numpy as np
import jax
import jax.numpy as jnp
from jax import lax
from jax.experimental import pallas as pl
from jax.experimental.pallas import tpu as pltpu

_LANE = 128
_SUBLANE = 8


def _round_up(x, m):
    return (x + m - 1) // m * m


def _pair_expand_kernel(oh_a_ref, oh_b_ref, coords_ref, out_ref):
    """One grid step = a block of T images, flattened to (T*8, N_pad) rows.

    coords_ref : (T*8, N_pad) f32.  For image t, sublane row 8t holds the
                 batch index (imgnum % batch_size) replicated over the lane
                 (box index) axis, rows 8t+1..8t+4 hold x1,y1,x2,y2, rows
                 8t+5..8t+7 are zero pad.
    oh_a_ref / oh_b_ref : (N_pad, M_pad) f32 static one-hot selection matrices:
                 output column k selects source box idx_a[k] / idx_b[k]
                 (k < N -> (k, k) = original box; k >= N -> pair (b1, b2),
                 b1 < b2, row-major pair order).
    out_ref    : (T*8, M_pad) f32.  Per image, row 0 = batch index, rows 1,2 =
                 min(x1,y1) of the two selected boxes (union top-left), rows
                 3,4 = max(x2,y2) (union bottom-right); rows 5..7 stay zero.
    """
    c = coords_ref[...]                                     # (T*8, N_pad)
    # One-hot selection on the MXU; HIGHEST precision keeps the f32
    # coordinates exact through the bf16 passes (it's a pure copy/select).
    left = jnp.dot(c, oh_a_ref[...],
                   preferred_element_type=jnp.float32,
                   precision=lax.Precision.HIGHEST)         # (T*8, M_pad)
    right = jnp.dot(c, oh_b_ref[...],
                    preferred_element_type=jnp.float32,
                    precision=lax.Precision.HIGHEST)        # (T*8, M_pad)
    # rows 0..2 (idx, x1, y1) -> min, rows 3..7 (x2, y2, pad) -> max.
    # Row 0 has left == right (both boxes carry the same batch index), so
    # min() reproduces it; pad rows are zero either way.
    row = lax.broadcasted_iota(jnp.int32, left.shape, 0) % _SUBLANE
    out_ref[...] = jnp.where(row < 3,
                             jnp.minimum(left, right),
                             jnp.maximum(left, right))


def rois_pair_expanding(rois, batch_size, obj_num, *, images_per_block=None):
    """
    rois:       (total_boxes, 5) float32, columns [img_idx, x1, y1, x2, y2]
    batch_size: python int
    obj_num:    (num_images,) host int array of per-image object counts
    Returns (expanded_rois, indices_list) matching the PyTorch module with
    separate=False (indices_list is empty on that path).
    expanded_rois: (num_images*M, 5), M = N + N*(N-1)//2, rows per image are
    the N original boxes followed by union boxes of pairs (b1, b2), b1 < b2,
    in row-major pair order; column 0 is imgnum % batch_size.
    """
    obj_num = np.asarray(obj_num)
    num_images = int(obj_num.shape[0])
    counts = [int(c) for c in obj_num]
    # TODO(synk): ragged per-image object counts give a data-dependent output
    # shape; supporting them needs a scalar-prefetch (SMEM offset table)
    # design.  Here we require a uniform count per image.
    assert all(c == counts[0] for c in counts), "uniform obj_num per image required"
    n = counts[0]
    if num_images == 0 or n == 0:
        return jnp.zeros((0, 5), jnp.float32), []

    m = n + n * (n - 1) // 2                       # originals + unordered pairs
    n_pad = _round_up(n, _LANE)
    m_pad = _round_up(m, _LANE)

    # ---- static selection tables (host-side numpy; n is static) -------------
    iu0, iu1 = np.triu_indices(n, 1)               # row-major (b1, b2), b1 < b2
    idx_a = np.concatenate([np.arange(n), iu0]).astype(np.int64)
    idx_b = np.concatenate([np.arange(n), iu1]).astype(np.int64)
    oh_a = np.zeros((n_pad, m_pad), np.float32)
    oh_b = np.zeros((n_pad, m_pad), np.float32)
    oh_a[idx_a, np.arange(m)] = 1.0
    oh_b[idx_b, np.arange(m)] = 1.0
    oh_a = jnp.asarray(oh_a)
    oh_b = jnp.asarray(oh_b)

    # ---- lane-dense input layout: (image, channel, box index) ---------------
    # channel 0 = batch index, channels 1..4 = x1,y1,x2,y2, channels 5..7 = pad
    coords = jnp.asarray(rois)[:, 1:5].astype(jnp.float32).reshape(num_images, n, 4)
    coords_t = jnp.swapaxes(coords, 1, 2)                      # (I, 4, N)
    bidx = (jnp.arange(num_images, dtype=jnp.int32) % batch_size).astype(jnp.float32)
    row0 = jnp.broadcast_to(bidx[:, None, None], (num_images, 1, n))
    coords5 = jnp.concatenate([row0, coords_t], axis=1)        # (I, 5, N)

    if images_per_block is None:
        # Target fat blocks (amortize per-step overhead, taller MXU LHS) while
        # keeping the double-buffered output block comfortably inside VMEM.
        budget_rows = max(_SUBLANE, (4 << 20) // (2 * 4 * m_pad))
        images_per_block = max(1, min(32, budget_rows // _SUBLANE))
    t = max(1, min(int(images_per_block), num_images))
    grid = pl.cdiv(num_images, t)
    p_img = grid * t                                           # padded image count

    coords5 = jnp.pad(
        coords5,
        ((0, p_img - num_images), (0, _SUBLANE - 5), (0, n_pad - n)))
    coords_flat = coords5.reshape(p_img * _SUBLANE, n_pad)     # (P*8, N_pad)

    rows = t * _SUBLANE
    out_flat = pl.pallas_call(
        _pair_expand_kernel,
        out_shape=jax.ShapeDtypeStruct((p_img * _SUBLANE, m_pad), jnp.float32),
        grid_spec=pltpu.PrefetchScalarGridSpec(
            num_scalar_prefetch=0,
            grid=(grid,),
            in_specs=[
                pl.BlockSpec((n_pad, m_pad), lambda b: (0, 0)),  # oh_a (resident)
                pl.BlockSpec((n_pad, m_pad), lambda b: (0, 0)),  # oh_b (resident)
                pl.BlockSpec((rows, n_pad), lambda b: (b, 0)),   # coords block
            ],
            out_specs=pl.BlockSpec((rows, m_pad), lambda b: (b, 0)),
        ),
        compiler_params=pltpu.CompilerParams(
            dimension_semantics=("parallel",)),
        # TODO(synk): for very large N (>~512 RoIs) the (N_pad, M_pad) one-hot
        # selection matrices outgrow default scoped VMEM; tile the pair (M)
        # dimension with a second grid axis and/or raise vmem_limit_bytes.
    )(oh_a, oh_b, coords_flat)

    # ---- back to the reference row layout (cheap XLA plumbing) --------------
    # rows 0..4 per image are already [idx, x1, y1, x2, y2]; just slice/permute.
    out = out_flat.reshape(p_img, _SUBLANE, m_pad)[:num_images, 0:5, 0:m]
    expanded = jnp.swapaxes(out, 1, 2).reshape(num_images * m, 5)

    # TODO(synk): the reference raises on degenerate boxes; a host-side bool()
    # check here would force a device->host sync (and break under jit), so the
    # check is deferred to the caller.
    return expanded, []  # separate=False path never populates indices_list


# ----------------------------------------------------------------------------
# reference + self-test
# ----------------------------------------------------------------------------
def _reference(rois, batch_size, obj_num):
    rois = np.asarray(rois)
    obj_num = np.asarray(obj_num)
    out = []
    begin = 0
    for imgnum in range(obj_num.shape[0]):
        n = int(obj_num[imgnum])
        cur = rois[begin:begin + n, 1:5]
        boxes = [cur]
        for b1 in range(n):
            for b2 in range(b1 + 1, n):
                tmin = np.minimum(cur[b1, 0:2], cur[b2, 0:2])
                tmax = np.maximum(cur[b1, 2:4], cur[b2, 2:4])
                boxes.append(np.concatenate([tmin, tmax])[None, :])
        allb = np.concatenate(boxes, 0)
        col0 = np.full((allb.shape[0], 1), imgnum % batch_size, dtype=allb.dtype)
        out.append(np.concatenate([col0, allb], 1))
        begin += n
    return np.concatenate(out, 0)


def _make_inputs(key, num_images, n_obj):
    k1, k2 = jax.random.split(key)
    total = num_images * n_obj
    xy = jax.random.uniform(k1, (total, 2), minval=0.0, maxval=8.0)
    wh = jax.random.uniform(k2, (total, 2), minval=1.0, maxval=8.0)
    img_col = jnp.repeat(jnp.arange(num_images, dtype=jnp.float32), n_obj)[:, None]
    rois = jnp.concatenate([img_col, xy, xy + wh], axis=1)      # (total, 5)
    obj_num = np.full((num_images,), n_obj, dtype=np.int32)
    return rois, obj_num


if __name__ == "__main__":
    key = jax.random.PRNGKey(0)
    # (batch_size, num_images, n_obj, images_per_block)
    configs = [
        (2, 2, 4, None),   # original demo: M = 4 + 6 = 10
        (3, 3, 5, 2),      # M = 15, exercises grid > 1 and padded image block
        (2, 2, 1, None),   # single object per image: originals only, no pairs
        (2, 5, 3, None),   # odd image count, default fat block
    ]
    for i, (bs, ni, n, ipb) in enumerate(configs):
        rois, obj_num = _make_inputs(jax.random.fold_in(key, i), ni, n)
        expanded, indices_list = rois_pair_expanding(
            rois, bs, obj_num, images_per_block=ipb)
        expanded = jax.block_until_ready(expanded)

        ref = _reference(np.asarray(rois), bs, obj_num)
        assert expanded.shape == ref.shape, (i, expanded.shape, ref.shape)
        assert np.allclose(np.asarray(expanded), ref, atol=1e-4), f"mismatch cfg {i}"
        assert indices_list == []

    print("KERNEL_OK")
</pallas_src>

<mosaic_0001>
module attributes {stable_mosaic.version = 11 : i64} {
  func.func @_pair_expand_kernel(%arg0: i32, %arg1: memref<128x128xf32, #tpu.memory_space<vmem>>, %arg2: memref<128x128xf32, #tpu.memory_space<vmem>>, %arg3: memref<16x128xf32, #tpu.memory_space<vmem>>, %arg4: memref<16x128xf32, #tpu.memory_space<vmem>>) attributes {dimension_semantics = [#tpu.dimension_semantics<parallel>], iteration_bounds = array<i64: 1>, scalar_prefetch = 0 : i64, scratch_operands = 0 : i64, tpu.core_type = #tpu.core_type<tc>, window_params = [{pipeline_mode = #tpu.pipeline_mode<synchronous>, transform_indices = @transform_0, window_bounds = array<i64: 128, 128>}, {pipeline_mode = #tpu.pipeline_mode<synchronous>, transform_indices = @transform_1, window_bounds = array<i64: 128, 128>}, {transform_indices = @transform_2, window_bounds = array<i64: 16, 128>}, {transform_indices = @transform_3, window_bounds = array<i64: 16, 128>}]} {
    %c0 = arith.constant 0 : index
    %c0_0 = arith.constant 0 : index
    %0 = vector.load %arg3[%c0, %c0_0] : memref<16x128xf32, #tpu.memory_space<vmem>>, vector<16x128xf32>
    %c0_1 = arith.constant 0 : index
    %c0_2 = arith.constant 0 : index
    %1 = vector.load %arg1[%c0_1, %c0_2] : memref<128x128xf32, #tpu.memory_space<vmem>>, vector<128x128xf32>
    %cst = arith.constant dense<0.000000e+00> : vector<16x128xf32>
    %2 = tpu.matmul %0, %1, %cst {dimension_numbers = #tpu.dot_dimension_numbers<[1], [0], [0], [1], [0, 0, 1, 1], [], []>, precision = #tpu.contract_precision<fp32>} : vector<16x128xf32>, vector<128x128xf32>, vector<16x128xf32> -> vector<16x128xf32>
    %c0_3 = arith.constant 0 : index
    %c0_4 = arith.constant 0 : index
    %3 = vector.load %arg2[%c0_3, %c0_4] : memref<128x128xf32, #tpu.memory_space<vmem>>, vector<128x128xf32>
    %cst_5 = arith.constant dense<0.000000e+00> : vector<16x128xf32>
    %4 = tpu.matmul %0, %3, %cst_5 {dimension_numbers = #tpu.dot_dimension_numbers<[1], [0], [0], [1], [0, 0, 1, 1], [], []>, precision = #tpu.contract_precision<fp32>} : vector<16x128xf32>, vector<128x128xf32>, vector<16x128xf32> -> vector<16x128xf32>
    %5 = tpu.iota {dimensions = array<i32: 0>} : vector<16x128xi32>
    %c8_i32 = arith.constant 8 : i32
    %c0_i32 = arith.constant 0 : i32
    %6 = arith.cmpi eq, %c8_i32, %c0_i32 : i32
    %c1_i32 = arith.constant 1 : i32
    %7 = arith.select %6, %c1_i32, %c8_i32 : i32
    %8 = vector.broadcast %7 : i32 to vector<16x128xi32>
    %9 = arith.remsi %5, %8 : vector<16x128xi32>
    %c0_i32_6 = arith.constant 0 : i32
    %10 = vector.broadcast %c0_i32_6 : i32 to vector<16x128xi32>
    %11 = arith.cmpi ne, %9, %10 : vector<16x128xi32>
    %c0_i32_7 = arith.constant 0 : i32
    %12 = vector.broadcast %c0_i32_7 : i32 to vector<16x128xi32>
    %13 = arith.cmpi slt, %9, %12 : vector<16x128xi32>
    %c0_i32_8 = arith.constant 0 : i32
    %14 = arith.cmpi slt, %7, %c0_i32_8 : i32
    %15 = vector.broadcast %14 : i1 to vector<16x128xi1>
    %16 = vector.broadcast %15 : vector<16x128xi1> to vector<16x128xi1>
    %17 = arith.xori %13, %16 : vector<16x128xi1>
    %18 = arith.andi %17, %11 : vector<16x128xi1>
    %19 = vector.broadcast %7 : i32 to vector<16x128xi32>
    %20 = arith.addi %9, %19 : vector<16x128xi32>
    %21 = arith.select %18, %20, %9 : vector<16x128xi1>, vector<16x128xi32>
    %c3_i32 = arith.constant 3 : i32
    %22 = vector.broadcast %c3_i32 : i32 to vector<16x128xi32>
    %23 = arith.cmpi slt, %21, %22 : vector<16x128xi32>
    %24 = arith.minimumf %2, %4 : vector<16x128xf32>
    %25 = arith.maximumf %2, %4 : vector<16x128xf32>
    %26 = arith.select %23, %24, %25 : vector<16x128xi1>, vector<16x128xf32>
    %c0_9 = arith.constant 0 : index
    %c0_10 = arith.constant 0 : index
    %27 = vector.load %arg4[%c0_9, %c0_10] : memref<16x128xf32, #tpu.memory_space<vmem>>, vector<16x128xf32>
    tpu.vector_store %arg4[%c0_9, %c0_10], %26 {strides = array<i32>} : memref<16x128xf32, #tpu.memory_space<vmem>>, vector<16x128xf32>,
    return
  }
  func.func @transform_0(%arg0: i32) -> (i32, i32) {
    %c0_i32 = arith.constant 0 : i32
    %c0_i32_0 = arith.constant 0 : i32
    %c0_i32_1 = arith.constant 0 : i32
    return %c0_i32, %c0_i32_0 : i32, i32
  }
  func.func @transform_1(%arg0: i32) -> (i32, i32) {
    %c0_i32 = arith.constant 0 : i32
    %c0_i32_0 = arith.constant 0 : i32
    %c0_i32_1 = arith.constant 0 : i32
    return %c0_i32, %c0_i32_0 : i32, i32
  }
  func.func @transform_2(%arg0: i32) -> (i32, i32) {
    %c0_i32 = arith.constant 0 : i32
    %c0_i32_0 = arith.constant 0 : i32
    return %arg0, %c0_i32 : i32, i32
  }
  func.func @transform_3(%arg0: i32) -> (i32, i32) {
    %c0_i32 = arith.constant 0 : i32
    %c0_i32_0 = arith.constant 0 : i32
    return %arg0, %c0_i32 : i32, i32
  }
}

</mosaic_0001>

<llo_original>
// kernel: tpu_custom_call.1
$region0: #{tpu_custom_call.1}
  #allocation0 [shape = 'u32[]', space=smem, size = 0x4, offset = 0x4, fixed_abs, tag = 'smem constant byte address 0x4 - core index']
  #allocation1 [shape = 'u32[72,128]{1,0:T(1,128)}', space=vmem, size = 0x9000, scoped, tag = 'internal scratch']
  %s0 = inlined_call_operand.hbm [shape: f32[128,128], index: 0, kind: input, shape index: {}]
  %s1 = inlined_call_operand.hbm [shape: f32[128,128], index: 1, kind: input, shape index: {}]
  %s2 = inlined_call_operand.hbm [shape: f32[16,128], index: 2, kind: input, shape index: {}]
  %s3 = inlined_call_operand.hbm [shape: f32[16,128], index: 3, kind: output, shape index: {}]
  %s4 = sld [smem:[#allocation0]]
  $region34: #{tpu_custom_call.1} parent=0
    _
  %s6 = ssub.s32 1, %s4
  %s7 = scalar_select 0, %s6, %s4
  $region1: #{tpu_custom_call.1} parent=0
    #allocation2 [shape = 'u8[65536]{0}', space=vmem, size = 0x10000, scoped, tag = 'input window, operand 0, single buffered']
    #allocation3 [shape = 's32[1]{0}', space=sflag, size = 0x4, scoped, tag = 'scoped memory for tpu_custom_call.1']
    #allocation4 [shape = 's32[1]{0}', space=sflag, size = 0x4, scoped, tag = 'scoped memory for tpu_custom_call.1']
    #allocation5 [shape = 'u8[65536]{0}', space=vmem, size = 0x10000, scoped, tag = 'input window, operand 1, single buffered']
    #allocation6 [shape = 's32[1]{0}', space=sflag, size = 0x4, scoped, tag = 'scoped memory for tpu_custom_call.1']
    #allocation7 [shape = 'u8[8192]{0}', space=vmem, size = 0x2000, scoped, tag = 'input window, operand 2, single buffered']
    #allocation8 [shape = 'u8[8192]{0}', space=vmem, size = 0x2000, scoped, tag = 'output window, operand 0, single buffered']
    %8 = vsyncpa [#allocation3], 0
    %9 = vsyncpa [#allocation6], 0
    %10 = vsyncpa [#allocation4], 0
    // Predicated region
    $region2: #{tpu_custom_call.1} parent=1 // pred_check
      _
    $region3: #{tpu_custom_call.1} parent=1 // pred_check_branch
      %12 = sbr.rel (0) target = $region5
    $region4: #{tpu_custom_call.1} parent=1 // pred_region
      %14 = vsyncadd [#allocation3], 0
      %s15 = sshll.u32 %s0, 4
      %s16 = int_to_ptr.hbm [resolvable:$true] %s15
      %s17 = sshll.u32 [#allocation2], 4
      %s18 = int_to_ptr.vmem [resolvable:$true] %s17
      %23 = dma.hbm_to_vmem [thread:$0]  %s16, 2048, %s18, [#allocation3], 128, 128, 8
    $region5: #{tpu_custom_call.1} parent=1 // pred_fallthru
      _
    // Predicated region
    $region6: #{tpu_custom_call.1} parent=1 // pred_check
      _
    $region7: #{tpu_custom_call.1} parent=1 // pred_check_branch
      %25 = sbr.rel (0) target = $region9
    $region8: #{tpu_custom_call.1} parent=1 // pred_region
      %27 = vsyncadd [#allocation6], 0
      %s28 = sshll.u32 %s1, 4
      %s29 = int_to_ptr.hbm [resolvable:$true] %s28
      %s30 = sshll.u32 [#allocation5], 4
      %s31 = int_to_ptr.vmem [resolvable:$true] %s30
      %36 = dma.hbm_to_vmem [thread:$0]  %s29, 2048, %s31, [#allocation6], 128, 128, 8
    $region9: #{tpu_custom_call.1} parent=1 // pred_fallthru
      _
    // Predicated region
    $region10: #{tpu_custom_call.1} parent=1 // pred_check
      _
    $region11: #{tpu_custom_call.1} parent=1 // pred_check_branch
      %38 = sbr.rel (0) target = $region13
    $region12: #{tpu_custom_call.1} parent=1 // pred_region
      %40 = vsyncadd [#allocation6], 0
      %s41 = sshll.u32 %s2, 4
      %s42 = int_to_ptr.hbm [resolvable:$true] %s41
      %s43 = sshll.u32 [#allocation7], 4
      %s44 = int_to_ptr.vmem [resolvable:$true] %s43
      %49 = dma.hbm_to_vmem [thread:$0]  %s42, 256, %s44, [#allocation6], 128, 128, 8
    $region13: #{tpu_custom_call.1} parent=1 // pred_fallthru
      _
    // Predicated region
    $region14: #{tpu_custom_call.1} parent=1 // pred_check
      _
    $region15: #{tpu_custom_call.1} parent=1 // pred_check_branch
      %51 = sbr.rel (0) target = $region17
    $region16: #{tpu_custom_call.1} parent=1 // pred_region
      %53 = dma.done [#allocation3], 2048
    $region17: #{tpu_custom_call.1} parent=1 // pred_fallthru
      _
    // Predicated region
    $region18: #{tpu_custom_call.1} parent=1 // pred_check
      _
    $region19: #{tpu_custom_call.1} parent=1 // pred_check_branch
      %55 = sbr.rel (0) target = $region21
    $region20: #{tpu_custom_call.1} parent=1 // pred_region
      %57 = dma.done [#allocation6], 2048
    $region21: #{tpu_custom_call.1} parent=1 // pred_fallthru
      _
    // Predicated region
    $region22: #{tpu_custom_call.1} parent=1 // pred_check
      _
    $region23: #{tpu_custom_call.1} parent=1 // pred_check_branch
      %59 = sbr.rel (0) target = $region25
    $region24: #{tpu_custom_call.1} parent=1 // pred_region
      %61 = dma.done [#allocation6], 256
    $region25: #{tpu_custom_call.1} parent=1 // pred_fallthru
      _
    %v62 = vld [vmem:[#allocation7] sm:$0xff]
    %v63 = vld [vmem:[#allocation7 + $0x8] sm:$0xff]
    %v64 = vld [vmem:[#allocation2] sm:$0xff]
    %v65 = vld [vmem:[#allocation2 + $0x8] sm:$0xff]
    %v66 = vld [vmem:[#allocation2 + $0x10] sm:$0xff]
    %v67 = vld [vmem:[#allocation2 + $0x18] sm:$0xff]
    %v68 = vld [vmem:[#allocation2 + $0x20] sm:$0xff]
    %v69 = vld [vmem:[#allocation2 + $0x28] sm:$0xff]
    %v70 = vld [vmem:[#allocation2 + $0x30] sm:$0xff]
    %v71 = vld [vmem:[#allocation2 + $0x38] sm:$0xff]
    %v72 = vld [vmem:[#allocation2 + $0x40] sm:$0xff]
    %v73 = vld [vmem:[#allocation2 + $0x48] sm:$0xff]
    %v74 = vld [vmem:[#allocation2 + $0x50] sm:$0xff]
    %v75 = vld [vmem:[#allocation2 + $0x58] sm:$0xff]
    %v76 = vld [vmem:[#allocation2 + $0x60] sm:$0xff]
    %v77 = vld [vmem:[#allocation2 + $0x68] sm:$0xff]
    %v78 = vld [vmem:[#allocation2 + $0x70] sm:$0xff]
    %v79 = vld [vmem:[#allocation2 + $0x78] sm:$0xff]
    %v80 = vand.u32 %v79, 4294901760
    %81 = vmatpush.msra.mxu0 %v80
    %v82 = vand.u32 %v78, 4294901760
    %83 = vmatpush.msra.mxu0 %v82
    %v84 = vand.u32 %v77, 4294901760
    %85 = vmatpush.msra.mxu0 %v84
    %v86 = vand.u32 %v76, 4294901760
    %87 = vmatpush.msra.mxu0 %v86
    %v88 = vand.u32 %v75, 4294901760
    %89 = vmatpush.msra.mxu0 %v88
    %v90 = vand.u32 %v74, 4294901760
    %91 = vmatpush.msra.mxu0 %v90
    %v92 = vand.u32 %v73, 4294901760
    %93 = vmatpush.msra.mxu0 %v92
    %v94 = vand.u32 %v72, 4294901760
    %95 = vmatpush.msra.mxu0 %v94
    %v96 = vand.u32 %v71, 4294901760
    %97 = vmatpush.msra.mxu0 %v96
    %v98 = vand.u32 %v70, 4294901760
    %99 = vmatpush.msra.mxu0 %v98
    %v100 = vand.u32 %v69, 4294901760
    %101 = vmatpush.msra.mxu0 %v100
    %v102 = vand.u32 %v68, 4294901760
    %103 = vmatpush.msra.mxu0 %v102
    %v104 = vand.u32 %v67, 4294901760
    %105 = vmatpush.msra.mxu0 %v104
    %v106 = vand.u32 %v66, 4294901760
    %107 = vmatpush.msra.mxu0 %v106
    %v108 = vand.u32 %v65, 4294901760
    %109 = vmatpush.msra.mxu0 %v108
    %v110 = vand.u32 %v64, 4294901760
    %111 = vmatpush.msra.mxu0 %v110
    %v112 = vand.u32 %v62, 4294901760
    %v113 = vsub.f32 %v62, %v112
    %v114 = vand.u32 %v113, 4294901760
    %v115 = vsub.f32 %v113, %v114
    %v116 = vand.u32 %v115, 4294901760
    %117 = vmatmul.f32.gmra.mxu0 %v116
    %v118 = vpop.f32.mrf.mxu0
    %v119 = vadd.f32 0.0, %v118
    %v120 = vand.u32 %v63, 4294901760
    %v121 = vsub.f32 %v63, %v120
    %v122 = vand.u32 %v121, 4294901760
    %v123 = vsub.f32 %v121, %v122
    %v124 = vand.u32 %v123, 4294901760
    %125 = vmatmul.f32.gmra.mxu0 %v124
    %v126 = vpop.f32.mrf.mxu0
    %v127 = vadd.f32 0.0, %v126
    %128 = vdwg.mxu0
    %v129 = vand.u32 %v79, 4294901760
    %v130 = vsub.f32 %v79, %v129
    %v131 = vand.u32 %v130, 4294901760
    %v132 = vsub.f32 %v130, %v131
    %v133 = vand.u32 %v132, 4294901760
    %134 = vmatpush.msra.mxu0 %v133
    %v135 = vand.u32 %v78, 4294901760
    %v136 = vsub.f32 %v78, %v135
    %v137 = vand.u32 %v136, 4294901760
    %v138 = vsub.f32 %v136, %v137
    %v139 = vand.u32 %v138, 4294901760
    %140 = vmatpush.msra.mxu0 %v139
    %v141 = vand.u32 %v77, 4294901760
    %v142 = vsub.f32 %v77, %v141
    %v143 = vand.u32 %v142, 4294901760
    %v144 = vsub.f32 %v142, %v143
    %v145 = vand.u32 %v144, 4294901760
    %146 = vmatpush.msra.mxu0 %v145
    %v147 = vand.u32 %v76, 4294901760
    %v148 = vsub.f32 %v76, %v147
    %v149 = vand.u32 %v148, 4294901760
    %v150 = vsub.f32 %v148, %v149
    %v151 = vand.u32 %v150, 4294901760
    %152 = vmatpush.msra.mxu0 %v151
    %v153 = vand.u32 %v75, 4294901760
    %v154 = vsub.f32 %v75, %v153
    %v155 = vand.u32 %v154, 4294901760
    %v156 = vsub.f32 %v154, %v155
    %v157 = vand.u32 %v156, 4294901760
    %158 = vmatpush.msra.mxu0 %v157
    %v159 = vand.u32 %v74, 4294901760
    %v160 = vsub.f32 %v74, %v159
    %v161 = vand.u32 %v160, 4294901760
    %v162 = vsub.f32 %v160, %v161
    %v163 = vand.u32 %v162, 4294901760
    %164 = vmatpush.msra.mxu0 %v163
    %v165 = vand.u32 %v73, 4294901760
    %v166 = vsub.f32 %v73, %v165
    %v167 = vand.u32 %v166, 4294901760
    %v168 = vsub.f32 %v166, %v167
    %v169 = vand.u32 %v168, 4294901760
    %170 = vmatpush.msra.mxu0 %v169
    %v171 = vand.u32 %v72, 4294901760
    %v172 = vsub.f32 %v72, %v171
    %v173 = vand.u32 %v172, 4294901760
    %v174 = vsub.f32 %v172, %v173
    %v175 = vand.u32 %v174, 4294901760
    %176 = vmatpush.msra.mxu0 %v175
    %v177 = vand.u32 %v71, 4294901760
    %v178 = vsub.f32 %v71, %v177
    %v179 = vand.u32 %v178, 4294901760
    %v180 = vsub.f32 %v178, %v179
    %v181 = vand.u32 %v180, 4294901760
    %182 = vmatpush.msra.mxu0 %v181
    %v183 = vand.u32 %v70, 4294901760
    %v184 = vsub.f32 %v70, %v183
    %v185 = vand.u32 %v184, 4294901760
    %v186 = vsub.f32 %v184, %v185
    %v187 = vand.u32 %v186, 4294901760
    %188 = vmatpush.msra.mxu0 %v187
    %v189 = vand.u32 %v69, 4294901760
    %v190 = vsub.f32 %v69, %v189
    %v191 = vand.u32 %v190, 4294901760
    %v192 = vsub.f32 %v190, %v191
    %v193 = vand.u32 %v192, 4294901760
    %194 = vmatpush.msra.mxu0 %v193
    %v195 = vand.u32 %v68, 4294901760
    %v196 = vsub.f32 %v68, %v195
    %v197 = vand.u32 %v196, 4294901760
    %v198 = vsub.f32 %v196, %v197
    %v199 = vand.u32 %v198, 4294901760
    %200 = vmatpush.msra.mxu0 %v199
    %v201 = vand.u32 %v67, 4294901760
    %v202 = vsub.f32 %v67, %v201
    %v203 = vand.u32 %v202, 4294901760
    %v204 = vsub.f32 %v202, %v203
    %v205 = vand.u32 %v204, 4294901760
    %206 = vmatpush.msra.mxu0 %v205
    %v207 = vand.u32 %v66, 4294901760
    %v208 = vsub.f32 %v66, %v207
    %v209 = vand.u32 %v208, 4294901760
    %v210 = vsub.f32 %v208, %v209
    %v211 = vand.u32 %v210, 4294901760
    %212 = vmatpush.msra.mxu0 %v211
    %v213 = vand.u32 %v65, 4294901760
    %v214 = vsub.f32 %v65, %v213
    %v215 = vand.u32 %v214, 4294901760
    %v216 = vsub.f32 %v214, %v215
    %v217 = vand.u32 %v216, 4294901760
    %218 = vmatpush.msra.mxu0 %v217
    %v219 = vand.u32 %v64, 4294901760
    %v220 = vsub.f32 %v64, %v219
    %v221 = vand.u32 %v220, 4294901760
    %v222 = vsub.f32 %v220, %v221
    %v223 = vand.u32 %v222, 4294901760
    %224 = vmatpush.msra.mxu0 %v223
    %v225 = vand.u32 %v62, 4294901760
    %226 = vmatmul.f32.gmra.mxu0 %v225
    %v227 = vpop.f32.mrf.mxu0
    %v228 = vadd.f32 %v119, %v227
    %v229 = vand.u32 %v63, 4294901760
    %230 = vmatmul.f32.gmra.mxu0 %v229
    %v231 = vpop.f32.mrf.mxu0
    %v232 = vadd.f32 %v127, %v231
    %233 = vdwg.mxu0
    %v234 = vand.u32 %v79, 4294901760
    %v235 = vsub.f32 %v79, %v234
    %236 = vmatpush.msra.mxu0 %v235
    %v237 = vand.u32 %v78, 4294901760
    %v238 = vsub.f32 %v78, %v237
    %239 = vmatpush.msra.mxu0 %v238
    %v240 = vand.u32 %v77, 4294901760
    %v241 = vsub.f32 %v77, %v240
    %242 = vmatpush.msra.mxu0 %v241
    %v243 = vand.u32 %v76, 4294901760
    %v244 = vsub.f32 %v76, %v243
    %245 = vmatpush.msra.mxu0 %v244
    %v246 = vand.u32 %v75, 4294901760
    %v247 = vsub.f32 %v75, %v246
    %248 = vmatpush.msra.mxu0 %v247
    %v249 = vand.u32 %v74, 4294901760
    %v250 = vsub.f32 %v74, %v249
    %251 = vmatpush.msra.mxu0 %v250
    %v252 = vand.u32 %v73, 4294901760
    %v253 = vsub.f32 %v73, %v252
    %254 = vmatpush.msra.mxu0 %v253
    %v255 = vand.u32 %v72, 4294901760
    %v256 = vsub.f32 %v72, %v255
    %257 = vmatpush.msra.mxu0 %v256
    %v258 = vand.u32 %v71, 4294901760
    %v259 = vsub.f32 %v71, %v258
    %260 = vmatpush.msra.mxu0 %v259
    %v261 = vand.u32 %v70, 4294901760
    %v262 = vsub.f32 %v70, %v261
    %263 = vmatpush.msra.mxu0 %v262
    %v264 = vand.u32 %v69, 4294901760
    %v265 = vsub.f32 %v69, %v264
    %266 = vmatpush.msra.mxu0 %v265
    %v267 = vand.u32 %v68, 4294901760
    %v268 = vsub.f32 %v68, %v267
    %269 = vmatpush.msra.mxu0 %v268
    %v270 = vand.u32 %v67, 4294901760
    %v271 = vsub.f32 %v67, %v270
    %272 = vmatpush.msra.mxu0 %v271
    %v273 = vand.u32 %v66, 4294901760
    %v274 = vsub.f32 %v66, %v273
    %275 = vmatpush.msra.mxu0 %v274
    %v276 = vand.u32 %v65, 4294901760
    %v277 = vsub.f32 %v65, %v276
    %278 = vmatpush.msra.mxu0 %v277
    %v279 = vand.u32 %v64, 4294901760
    %v280 = vsub.f32 %v64, %v279
    %281 = vmatpush.msra.mxu0 %v280
    %v282 = vand.u32 %v62, 4294901760
    %v283 = vsub.f32 %v62, %v282
    %284 = vmatmul.f32.gmra.mxu0 %v283
    %v285 = vpop.f32.mrf.mxu0
    %v286 = vadd.f32 %v228, %v285
    %v287 = vand.u32 %v63, 4294901760
    %v288 = vsub.f32 %v63, %v287
    %289 = vmatmul.f32.gmra.mxu0 %v288
    %v290 = vpop.f32.mrf.mxu0
    %v291 = vadd.f32 %v232, %v290
    %292 = vdwg.mxu0
    %v293 = vand.u32 %v79, 4294901760
    %294 = vmatpush.msra.mxu0 %v293
    %v295 = vand.u32 %v78, 4294901760
    %296 = vmatpush.msra.mxu0 %v295
    %v297 = vand.u32 %v77, 4294901760
    %298 = vmatpush.msra.mxu0 %v297
    %v299 = vand.u32 %v76, 4294901760
    %300 = vmatpush.msra.mxu0 %v299
    %v301 = vand.u32 %v75, 4294901760
    %302 = vmatpush.msra.mxu0 %v301
    %v303 = vand.u32 %v74, 4294901760
    %304 = vmatpush.msra.mxu0 %v303
    %v305 = vand.u32 %v73, 4294901760
    %306 = vmatpush.msra.mxu0 %v305
    %v307 = vand.u32 %v72, 4294901760
    %308 = vmatpush.msra.mxu0 %v307
    %v309 = vand.u32 %v71, 4294901760
    %310 = vmatpush.msra.mxu0 %v309
    %v311 = vand.u32 %v70, 4294901760
    %312 = vmatpush.msra.mxu0 %v311
    %v313 = vand.u32 %v69, 4294901760
    %314 = vmatpush.msra.mxu0 %v313
    %v315 = vand.u32 %v68, 4294901760
    %316 = vmatpush.msra.mxu0 %v315
    %v317 = vand.u32 %v67, 4294901760
    %318 = vmatpush.msra.mxu0 %v317
    %v319 = vand.u32 %v66, 4294901760
    %320 = vmatpush.msra.mxu0 %v319
    %v321 = vand.u32 %v65, 4294901760
    %322 = vmatpush.msra.mxu0 %v321
    %v323 = vand.u32 %v64, 4294901760
    %324 = vmatpush.msra.mxu0 %v323
    %v325 = vand.u32 %v62, 4294901760
    %v326 = vsub.f32 %v62, %v325
    %v327 = vand.u32 %v326, 4294901760
    %328 = vmatmul.f32.gmra.mxu0 %v327
    %v329 = vpop.f32.mrf.mxu0
    %v330 = vadd.f32 %v286, %v329
    %v331 = vand.u32 %v63, 4294901760
    %v332 = vsub.f32 %v63, %v331
    %v333 = vand.u32 %v332, 4294901760
    %334 = vmatmul.f32.gmra.mxu0 %v333
    %v335 = vpop.f32.mrf.mxu0
    %v336 = vadd.f32 %v291, %v335
    %337 = vdwg.mxu0
    %v338 = vand.u32 %v79, 4294901760
    %v339 = vsub.f32 %v79, %v338
    %v340 = vand.u32 %v339, 4294901760
    %341 = vmatpush.msra.mxu0 %v340
    %v342 = vand.u32 %v78, 4294901760
    %v343 = vsub.f32 %v78, %v342
    %v344 = vand.u32 %v343, 4294901760
    %345 = vmatpush.msra.mxu0 %v344
    %v346 = vand.u32 %v77, 4294901760
    %v347 = vsub.f32 %v77, %v346
    %v348 = vand.u32 %v347, 4294901760
    %349 = vmatpush.msra.mxu0 %v348
    %v350 = vand.u32 %v76, 4294901760
    %v351 = vsub.f32 %v76, %v350
    %v352 = vand.u32 %v351, 4294901760
    %353 = vmatpush.msra.mxu0 %v352
    %v354 = vand.u32 %v75, 4294901760
    %v355 = vsub.f32 %v75, %v354
    %v356 = vand.u32 %v355, 4294901760
    %357 = vmatpush.msra.mxu0 %v356
    %v358 = vand.u32 %v74, 4294901760
    %v359 = vsub.f32 %v74, %v358
    %v360 = vand.u32 %v359, 4294901760
    %361 = vmatpush.msra.mxu0 %v360
    %v362 = vand.u32 %v73, 4294901760
    %v363 = vsub.f32 %v73, %v362
    %v364 = vand.u32 %v363, 4294901760
    %365 = vmatpush.msra.mxu0 %v364
    %v366 = vand.u32 %v72, 4294901760
    %v367 = vsub.f32 %v72, %v366
    %v368 = vand.u32 %v367, 4294901760
    %369 = vmatpush.msra.mxu0 %v368
    %v370 = vand.u32 %v71, 4294901760
    %v371 = vsub.f32 %v71, %v370
    %v372 = vand.u32 %v371, 4294901760
    %373 = vmatpush.msra.mxu0 %v372
    %v374 = vand.u32 %v70, 4294901760
    %v375 = vsub.f32 %v70, %v374
    %v376 = vand.u32 %v375, 4294901760
    %377 = vmatpush.msra.mxu0 %v376
    %v378 = vand.u32 %v69, 4294901760
    %v379 = vsub.f32 %v69, %v378
    %v380 = vand.u32 %v379, 4294901760
    %381 = vmatpush.msra.mxu0 %v380
    %v382 = vand.u32 %v68, 4294901760
    %v383 = vsub.f32 %v68, %v382
    %v384 = vand.u32 %v383, 4294901760
    %385 = vmatpush.msra.mxu0 %v384
    %v386 = vand.u32 %v67, 4294901760
    %v387 = vsub.f32 %v67, %v386
    %v388 = vand.u32 %v387, 4294901760
    %389 = vmatpush.msra.mxu0 %v388
    %v390 = vand.u32 %v66, 4294901760
    %v391 = vsub.f32 %v66, %v390
    %v392 = vand.u32 %v391, 4294901760
    %393 = vmatpush.msra.mxu0 %v392
    %v394 = vand.u32 %v65, 4294901760
    %v395 = vsub.f32 %v65, %v394
    %v396 = vand.u32 %v395, 4294901760
    %397 = vmatpush.msra.mxu0 %v396
    %v398 = vand.u32 %v64, 4294901760
    %v399 = vsub.f32 %v64, %v398
    %v400 = vand.u32 %v399, 4294901760
    %401 = vmatpush.msra.mxu0 %v400
    %v402 = vand.u32 %v62, 4294901760
    %403 = vmatmul.f32.gmra.mxu0 %v402
    %v404 = vpop.f32.mrf.mxu0
    %v405 = vadd.f32 %v330, %v404
    %v406 = vand.u32 %v63, 4294901760
    %407 = vmatmul.f32.gmra.mxu0 %v406
    %v408 = vpop.f32.mrf.mxu0
    %v409 = vadd.f32 %v336, %v408
    %410 = vdwg.mxu0
    %v411 = vand.u32 %v79, 4294901760
    %412 = vmatpush.msra.mxu0 %v411
    %v413 = vand.u32 %v78, 4294901760
    %414 = vmatpush.msra.mxu0 %v413
    %v415 = vand.u32 %v77, 4294901760
    %416 = vmatpush.msra.mxu0 %v415
    %v417 = vand.u32 %v76, 4294901760
    %418 = vmatpush.msra.mxu0 %v417
    %v419 = vand.u32 %v75, 4294901760
    %420 = vmatpush.msra.mxu0 %v419
    %v421 = vand.u32 %v74, 4294901760
    %422 = vmatpush.msra.mxu0 %v421
    %v423 = vand.u32 %v73, 4294901760
    %424 = vmatpush.msra.mxu0 %v423
    %v425 = vand.u32 %v72, 4294901760
    %426 = vmatpush.msra.mxu0 %v425
    %v427 = vand.u32 %v71, 4294901760
    %428 = vmatpush.msra.mxu0 %v427
    %v429 = vand.u32 %v70, 4294901760
    %430 = vmatpush.msra.mxu0 %v429
    %v431 = vand.u32 %v69, 4294901760
    %432 = vmatpush.msra.mxu0 %v431
    %v433 = vand.u32 %v68, 4294901760
    %434 = vmatpush.msra.mxu0 %v433
    %v435 = vand.u32 %v67, 4294901760
    %436 = vmatpush.msra.mxu0 %v435
    %v437 = vand.u32 %v66, 4294901760
    %438 = vmatpush.msra.mxu0 %v437
    %v439 = vand.u32 %v65, 4294901760
    %440 = vmatpush.msra.mxu0 %v439
    %v441 = vand.u32 %v64, 4294901760
    %442 = vmatpush.msra.mxu0 %v441
    %v443 = vand.u32 %v62, 4294901760
    %444 = vmatmul.f32.gmra.mxu0 %v443
    %v445 = vpop.f32.mrf.mxu0
    %v446 = vadd.f32 %v405, %v445
    %v447 = vand.u32 %v63, 4294901760
    %448 = vmatmul.f32.gmra.mxu0 %v447
    %v449 = vpop.f32.mrf.mxu0
    %v450 = vadd.f32 %v409, %v449
    %451 = vdwg.mxu0
    %v452 = vld [vmem:[#allocation5] sm:$0xff]
    %v453 = vld [vmem:[#allocation5 + $0x8] sm:$0xff]
    %v454 = vld [vmem:[#allocation5 + $0x10] sm:$0xff]
    %v455 = vld [vmem:[#allocation5 + $0x18] sm:$0xff]
    %v456 = vld [vmem:[#allocation5 + $0x20] sm:$0xff]
    %v457 = vld [vmem:[#allocation5 + $0x28] sm:$0xff]
    %v458 = vld [vmem:[#allocation5 + $0x30] sm:$0xff]
    %v459 = vld [vmem:[#allocation5 + $0x38] sm:$0xff]
    %v460 = vld [vmem:[#allocation5 + $0x40] sm:$0xff]
    %v461 = vld [vmem:[#allocation5 + $0x48] sm:$0xff]
    %v462 = vld [vmem:[#allocation5 + $0x50] sm:$0xff]
    %v463 = vld [vmem:[#allocation5 + $0x58] sm:$0xff]
    %v464 = vld [vmem:[#allocation5 + $0x60] sm:$0xff]
    %v465 = vld [vmem:[#allocation5 + $0x68] sm:$0xff]
    %v466 = vld [vmem:[#allocation5 + $0x70] sm:$0xff]
    %v467 = vld [vmem:[#allocation5 + $0x78] sm:$0xff]
    %v468 = vand.u32 %v467, 4294901760
    %469 = vmatpush.msra.mxu0 %v468
    %v470 = vand.u32 %v466, 4294901760
    %471 = vmatpush.msra.mxu0 %v470
    %v472 = vand.u32 %v465, 4294901760
    %473 = vmatpush.msra.mxu0 %v472
    %v474 = vand.u32 %v464, 4294901760
    %475 = vmatpush.msra.mxu0 %v474
    %v476 = vand.u32 %v463, 4294901760
    %477 = vmatpush.msra.mxu0 %v476
    %v478 = vand.u32 %v462, 4294901760
    %479 = vmatpush.msra.mxu0 %v478
    %v480 = vand.u32 %v461, 4294901760
    %481 = vmatpush.msra.mxu0 %v480
    %v482 = vand.u32 %v460, 4294901760
    %483 = vmatpush.msra.mxu0 %v482
    %v484 = vand.u32 %v459, 4294901760
    %485 = vmatpush.msra.mxu0 %v484
    %v486 = vand.u32 %v458, 4294901760
    %487 = vmatpush.msra.mxu0 %v486
    %v488 = vand.u32 %v457, 4294901760
    %489 = vmatpush.msra.mxu0 %v488
    %v490 = vand.u32 %v456, 4294901760
    %491 = vmatpush.msra.mxu0 %v490
    %v492 = vand.u32 %v455, 4294901760
    %493 = vmatpush.msra.mxu0 %v492
    %v494 = vand.u32 %v454, 4294901760
    %495 = vmatpush.msra.mxu0 %v494
    %v496 = vand.u32 %v453, 4294901760
    %497 = vmatpush.msra.mxu0 %v496
    %v498 = vand.u32 %v452, 4294901760
    %499 = vmatpush.msra.mxu0 %v498
    %v500 = vand.u32 %v62, 4294901760
    %v501 = vsub.f32 %v62, %v500
    %v502 = vand.u32 %v501, 4294901760
    %v503 = vsub.f32 %v501, %v502
    %v504 = vand.u32 %v503, 4294901760
    %505 = vmatmul.f32.gmra.mxu0 %v504
    %v506 = vpop.f32.mrf.mxu0
    %v507 = vadd.f32 0.0, %v506
    %v508 = vand.u32 %v63, 4294901760
    %v509 = vsub.f32 %v63, %v508
    %v510 = vand.u32 %v509, 4294901760
    %v511 = vsub.f32 %v509, %v510
    %v512 = vand.u32 %v511, 4294901760
    %513 = vmatmul.f32.gmra.mxu0 %v512
    %v514 = vpop.f32.mrf.mxu0
    %v515 = vadd.f32 0.0, %v514
    %516 = vdwg.mxu0
    %v517 = vand.u32 %v467, 4294901760
    %v518 = vsub.f32 %v467, %v517
    %v519 = vand.u32 %v518, 4294901760
    %v520 = vsub.f32 %v518, %v519
    %v521 = vand.u32 %v520, 4294901760
    %522 = vmatpush.msra.mxu0 %v521
    %v523 = vand.u32 %v466, 4294901760
    %v524 = vsub.f32 %v466, %v523
    %v525 = vand.u32 %v524, 4294901760
    %v526 = vsub.f32 %v524, %v525
    %v527 = vand.u32 %v526, 4294901760
    %528 = vmatpush.msra.mxu0 %v527
    %v529 = vand.u32 %v465, 4294901760
    %v530 = vsub.f32 %v465, %v529
    %v531 = vand.u32 %v530, 4294901760
    %v532 = vsub.f32 %v530, %v531
    %v533 = vand.u32 %v532, 4294901760
    %534 = vmatpush.msra.mxu0 %v533
    %v535 = vand.u32 %v464, 4294901760
    %v536 = vsub.f32 %v464, %v535
    %v537 = vand.u32 %v536, 4294901760
    %v538 = vsub.f32 %v536, %v537
    %v539 = vand.u32 %v538, 4294901760
    %540 = vmatpush.msra.mxu0 %v539
    %v541 = vand.u32 %v463, 4294901760
    %v542 = vsub.f32 %v463, %v541
    %v543 = vand.u32 %v542, 4294901760
    %v544 = vsub.f32 %v542, %v543
    %v545 = vand.u32 %v544, 4294901760
    %546 = vmatpush.msra.mxu0 %v545
    %v547 = vand.u32 %v462, 4294901760
    %v548 = vsub.f32 %v462, %v547
    %v549 = vand.u32 %v548, 4294901760
    %v550 = vsub.f32 %v548, %v549
    %v551 = vand.u32 %v550, 4294901760
    %552 = vmatpush.msra.mxu0 %v551
    %v553 = vand.u32 %v461, 4294901760
    %v554 = vsub.f32 %v461, %v553
    %v555 = vand.u32 %v554, 4294901760
    %v556 = vsub.f32 %v554, %v555
    %v557 = vand.u32 %v556, 4294901760
    %558 = vmatpush.msra.mxu0 %v557
    %v559 = vand.u32 %v460, 4294901760
    %v560 = vsub.f32 %v460, %v559
    %v561 = vand.u32 %v560, 4294901760
    %v562 = vsub.f32 %v560, %v561
    %v563 = vand.u32 %v562, 4294901760
    %564 = vmatpush.msra.mxu0 %v563
    %v565 = vand.u32 %v459, 4294901760
    %v566 = vsub.f32 %v459, %v565
    %v567 = vand.u32 %v566, 4294901760
    %v568 = vsub.f32 %v566, %v567
    %v569 = vand.u32 %v568, 4294901760
    %570 = vmatpush.msra.mxu0 %v569
    %v571 = vand.u32 %v458, 4294901760
    %v572 = vsub.f32 %v458, %v571
    %v573 = vand.u32 %v572, 4294901760
    %v574 = vsub.f32 %v572, %v573
    %v575 = vand.u32 %v574, 4294901760
    %576 = vmatpush.msra.mxu0 %v575
    %v577 = vand.u32 %v457, 4294901760
    %v578 = vsub.f32 %v457, %v577
    %v579 = vand.u32 %v578, 4294901760
    %v580 = vsub.f32 %v578, %v579
    %v581 = vand.u32 %v580, 4294901760
    %582 = vmatpush.msra.mxu0 %v581
    %v583 = vand.u32 %v456, 4294901760
    %v584 = vsub.f32 %v456, %v583
    %v585 = vand.u32 %v584, 4294901760
    %v586 = vsub.f32 %v584, %v585
    %v587 = vand.u32 %v586, 4294901760
    %588 = vmatpush.msra.mxu0 %v587
    %v589 = vand.u32 %v455, 4294901760
    %v590 = vsub.f32 %v455, %v589
    %v591 = vand.u32 %v590, 4294901760
    %v592 = vsub.f32 %v590, %v591
    %v593 = vand.u32 %v592, 4294901760
    %594 = vmatpush.msra.mxu0 %v593
    %v595 = vand.u32 %v454, 4294901760
    %v596 = vsub.f32 %v454, %v595
    %v597 = vand.u32 %v596, 4294901760
    %v598 = vsub.f32 %v596, %v597
    %v599 = vand.u32 %v598, 4294901760
    %600 = vmatpush.msra.mxu0 %v599
    %v601 = vand.u32 %v453, 4294901760
    %v602 = vsub.f32 %v453, %v601
    %v603 = vand.u32 %v602, 4294901760
    %v604 = vsub.f32 %v602, %v603
    %v605 = vand.u32 %v604, 4294901760
    %606 = vmatpush.msra.mxu0 %v605
    %v607 = vand.u32 %v452, 4294901760
    %v608 = vsub.f32 %v452, %v607
    %v609 = vand.u32 %v608, 4294901760
    %v610 = vsub.f32 %v608, %v609
    %v611 = vand.u32 %v610, 4294901760
    %612 = vmatpush.msra.mxu0 %v611
    %v613 = vand.u32 %v62, 4294901760
    %614 = vmatmul.f32.gmra.mxu0 %v613
    %v615 = vpop.f32.mrf.mxu0
    %v616 = vadd.f32 %v507, %v615
    %v617 = vand.u32 %v63, 4294901760
    %618 = vmatmul.f32.gmra.mxu0 %v617
    %v619 = vpop.f32.mrf.mxu0
    %v620 = vadd.f32 %v515, %v619
    %621 = vdwg.mxu0
    %v622 = vand.u32 %v467, 4294901760
    %v623 = vsub.f32 %v467, %v622
    %624 = vmatpush.msra.mxu0 %v623
    %v625 = vand.u32 %v466, 4294901760
    %v626 = vsub.f32 %v466, %v625
    %627 = vmatpush.msra.mxu0 %v626
    %v628 = vand.u32 %v465, 4294901760
    %v629 = vsub.f32 %v465, %v628
    %630 = vmatpush.msra.mxu0 %v629
    %v631 = vand.u32 %v464, 4294901760
    %v632 = vsub.f32 %v464, %v631
    %633 = vmatpush.msra.mxu0 %v632
    %v634 = vand.u32 %v463, 4294901760
    %v635 = vsub.f32 %v463, %v634
    %636 = vmatpush.msra.mxu0 %v635
    %v637 = vand.u32 %v462, 4294901760
    %v638 = vsub.f32 %v462, %v637
    %639 = vmatpush.msra.mxu0 %v638
    %v640 = vand.u32 %v461, 4294901760
    %v641 = vsub.f32 %v461, %v640
    %642 = vmatpush.msra.mxu0 %v641
    %v643 = vand.u32 %v460, 4294901760
    %v644 = vsub.f32 %v460, %v643
    %645 = vmatpush.msra.mxu0 %v644
    %v646 = vand.u32 %v459, 4294901760
    %v647 = vsub.f32 %v459, %v646
    %648 = vmatpush.msra.mxu0 %v647
    %v649 = vand.u32 %v458, 4294901760
    %v650 = vsub.f32 %v458, %v649
    %651 = vmatpush.msra.mxu0 %v650
    %v652 = vand.u32 %v457, 4294901760
    %v653 = vsub.f32 %v457, %v652
    %654 = vmatpush.msra.mxu0 %v653
    %v655 = vand.u32 %v456, 4294901760
    %v656 = vsub.f32 %v456, %v655
    %657 = vmatpush.msra.mxu0 %v656
    %v658 = vand.u32 %v455, 4294901760
    %v659 = vsub.f32 %v455, %v658
    %660 = vmatpush.msra.mxu0 %v659
    %v661 = vand.u32 %v454, 4294901760
    %v662 = vsub.f32 %v454, %v661
    %663 = vmatpush.msra.mxu0 %v662
    %v664 = vand.u32 %v453, 4294901760
    %v665 = vsub.f32 %v453, %v664
    %666 = vmatpush.msra.mxu0 %v665
    %v667 = vand.u32 %v452, 4294901760
    %v668 = vsub.f32 %v452, %v667
    %669 = vmatpush.msra.mxu0 %v668
    %v670 = vand.u32 %v62, 4294901760
    %v671 = vsub.f32 %v62, %v670
    %672 = vmatmul.f32.gmra.mxu0 %v671
    %v673 = vpop.f32.mrf.mxu0
    %v674 = vadd.f32 %v616, %v673
    %v675 = vand.u32 %v63, 4294901760
    %v676 = vsub.f32 %v63, %v675
    %677 = vmatmul.f32.gmra.mxu0 %v676
    %v678 = vpop.f32.mrf.mxu0
    %v679 = vadd.f32 %v620, %v678
    %680 = vdwg.mxu0
    %v681 = vand.u32 %v467, 4294901760
    %682 = vmatpush.msra.mxu0 %v681
    %v683 = vand.u32 %v466, 4294901760
    %684 = vmatpush.msra.mxu0 %v683
    %v685 = vand.u32 %v465, 4294901760
    %686 = vmatpush.msra.mxu0 %v685
    %v687 = vand.u32 %v464, 4294901760
    %688 = vmatpush.msra.mxu0 %v687
    %v689 = vand.u32 %v463, 4294901760
    %690 = vmatpush.msra.mxu0 %v689
    %v691 = vand.u32 %v462, 4294901760
    %692 = vmatpush.msra.mxu0 %v691
    %v693 = vand.u32 %v461, 4294901760
    %694 = vmatpush.msra.mxu0 %v693
    %v695 = vand.u32 %v460, 4294901760
    %696 = vmatpush.msra.mxu0 %v695
    %v697 = vand.u32 %v459, 4294901760
    %698 = vmatpush.msra.mxu0 %v697
    %v699 = vand.u32 %v458, 4294901760
    %700 = vmatpush.msra.mxu0 %v699
    %v701 = vand.u32 %v457, 4294901760
    %702 = vmatpush.msra.mxu0 %v701
    %v703 = vand.u32 %v456, 4294901760
    %704 = vmatpush.msra.mxu0 %v703
    %v705 = vand.u32 %v455, 4294901760
    %706 = vmatpush.msra.mxu0 %v705
    %v707 = vand.u32 %v454, 4294901760
    %708 = vmatpush.msra.mxu0 %v707
    %v709 = vand.u32 %v453, 4294901760
    %710 = vmatpush.msra.mxu0 %v709
    %v711 = vand.u32 %v452, 4294901760
    %712 = vmatpush.msra.mxu0 %v711
    %v713 = vand.u32 %v62, 4294901760
    %v714 = vsub.f32 %v62, %v713
    %v715 = vand.u32 %v714, 4294901760
    %716 = vmatmul.f32.gmra.mxu0 %v715
    %v717 = vpop.f32.mrf.mxu0
    %v718 = vadd.f32 %v674, %v717
    %v719 = vand.u32 %v63, 4294901760
    %v720 = vsub.f32 %v63, %v719
    %v721 = vand.u32 %v720, 4294901760
    %722 = vmatmul.f32.gmra.mxu0 %v721
    %v723 = vpop.f32.mrf.mxu0
    %v724 = vadd.f32 %v679, %v723
    %725 = vdwg.mxu0
    %v726 = vand.u32 %v467, 4294901760
    %v727 = vsub.f32 %v467, %v726
    %v728 = vand.u32 %v727, 4294901760
    %729 = vmatpush.msra.mxu0 %v728
    %v730 = vand.u32 %v466, 4294901760
    %v731 = vsub.f32 %v466, %v730
    %v732 = vand.u32 %v731, 4294901760
    %733 = vmatpush.msra.mxu0 %v732
    %v734 = vand.u32 %v465, 4294901760
    %v735 = vsub.f32 %v465, %v734
    %v736 = vand.u32 %v735, 4294901760
    %737 = vmatpush.msra.mxu0 %v736
    %v738 = vand.u32 %v464, 4294901760
    %v739 = vsub.f32 %v464, %v738
    %v740 = vand.u32 %v739, 4294901760
    %741 = vmatpush.msra.mxu0 %v740
    %v742 = vand.u32 %v463, 4294901760
    %v743 = vsub.f32 %v463, %v742
    %v744 = vand.u32 %v743, 4294901760
    %745 = vmatpush.msra.mxu0 %v744
    %v746 = vand.u32 %v462, 4294901760
    %v747 = vsub.f32 %v462, %v746
    %v748 = vand.u32 %v747, 4294901760
    %749 = vmatpush.msra.mxu0 %v748
    %v750 = vand.u32 %v461, 4294901760
    %v751 = vsub.f32 %v461, %v750
    %v752 = vand.u32 %v751, 4294901760
    %753 = vmatpush.msra.mxu0 %v752
    %v754 = vand.u32 %v460, 4294901760
    %v755 = vsub.f32 %v460, %v754
    %v756 = vand.u32 %v755, 4294901760
    %757 = vmatpush.msra.mxu0 %v756
    %v758 = vand.u32 %v459, 4294901760
    %v759 = vsub.f32 %v459, %v758
    %v760 = vand.u32 %v759, 4294901760
    %761 = vmatpush.msra.mxu0 %v760
    %v762 = vand.u32 %v458, 4294901760
    %v763 = vsub.f32 %v458, %v762
    %v764 = vand.u32 %v763, 4294901760
    %765 = vmatpush.msra.mxu0 %v764
    %v766 = vand.u32 %v457, 4294901760
    %v767 = vsub.f32 %v457, %v766
    %v768 = vand.u32 %v767, 4294901760
    %769 = vmatpush.msra.mxu0 %v768
    %v770 = vand.u32 %v456, 4294901760
    %v771 = vsub.f32 %v456, %v770
    %v772 = vand.u32 %v771, 4294901760
    %773 = vmatpush.msra.mxu0 %v772
    %v774 = vand.u32 %v455, 4294901760
    %v775 = vsub.f32 %v455, %v774
    %v776 = vand.u32 %v775, 4294901760
    %777 = vmatpush.msra.mxu0 %v776
    %v778 = vand.u32 %v454, 4294901760
    %v779 = vsub.f32 %v454, %v778
    %v780 = vand.u32 %v779, 4294901760
    %781 = vmatpush.msra.mxu0 %v780
    %v782 = vand.u32 %v453, 4294901760
    %v783 = vsub.f32 %v453, %v782
    %v784 = vand.u32 %v783, 4294901760
    %785 = vmatpush.msra.mxu0 %v784
    %v786 = vand.u32 %v452, 4294901760
    %v787 = vsub.f32 %v452, %v786
    %v788 = vand.u32 %v787, 4294901760
    %789 = vmatpush.msra.mxu0 %v788
    %v790 = vand.u32 %v62, 4294901760
    %791 = vmatmul.f32.gmra.mxu0 %v790
    %v792 = vpop.f32.mrf.mxu0
    %v793 = vadd.f32 %v718, %v792
    %v794 = vand.u32 %v63, 4294901760
    %795 = vmatmul.f32.gmra.mxu0 %v794
    %v796 = vpop.f32.mrf.mxu0
    %v797 = vadd.f32 %v724, %v796
    %798 = vdwg.mxu0
    %v799 = vand.u32 %v467, 4294901760
    %800 = vmatpush.msra.mxu0 %v799
    %v801 = vand.u32 %v466, 4294901760
    %802 = vmatpush.msra.mxu0 %v801
    %v803 = vand.u32 %v465, 4294901760
    %804 = vmatpush.msra.mxu0 %v803
    %v805 = vand.u32 %v464, 4294901760
    %806 = vmatpush.msra.mxu0 %v805
    %v807 = vand.u32 %v463, 4294901760
    %808 = vmatpush.msra.mxu0 %v807
    %v809 = vand.u32 %v462, 4294901760
    %810 = vmatpush.msra.mxu0 %v809
    %v811 = vand.u32 %v461, 4294901760
    %812 = vmatpush.msra.mxu0 %v811
    %v813 = vand.u32 %v460, 4294901760
    %814 = vmatpush.msra.mxu0 %v813
    %v815 = vand.u32 %v459, 4294901760
    %816 = vmatpush.msra.mxu0 %v815
    %v817 = vand.u32 %v458, 4294901760
    %818 = vmatpush.msra.mxu0 %v817
    %v819 = vand.u32 %v457, 4294901760
    %820 = vmatpush.msra.mxu0 %v819
    %v821 = vand.u32 %v456, 4294901760
    %822 = vmatpush.msra.mxu0 %v821
    %v823 = vand.u32 %v455, 4294901760
    %824 = vmatpush.msra.mxu0 %v823
    %v825 = vand.u32 %v454, 4294901760
    %826 = vmatpush.msra.mxu0 %v825
    %v827 = vand.u32 %v453, 4294901760
    %828 = vmatpush.msra.mxu0 %v827
    %v829 = vand.u32 %v452, 4294901760
    %830 = vmatpush.msra.mxu0 %v829
    %v831 = vand.u32 %v62, 4294901760
    %832 = vmatmul.f32.gmra.mxu0 %v831
    %v833 = vpop.f32.mrf.mxu0
    %v834 = vadd.f32 %v793, %v833
    %v835 = vand.u32 %v63, 4294901760
    %836 = vmatmul.f32.gmra.mxu0 %v835
    %v837 = vpop.f32.mrf.mxu0
    %v838 = vadd.f32 %v797, %v837
    %839 = vdwg.mxu0
    %v840 = vlaneseq
    %v841 = vshrl.u32 %v840, 7
    %v842 = vadd.s32 %v841, 8
    %vm843 = vcmp.lt.s32.totalorder %v841, 0
    %v844 = vsub.s32 0, %v841
    %v845 = vsel %vm843, %v844, %v841
    %v846 = vshrl.u32 %v845, 3
    %v847 = vand.u32 %v845, 7
    %v848 = vsub.s32 0, %v847
    %v849 = vsel %vm843, %v848, %v847
    %vm850 = vcmp.lt.s32.totalorder %v842, 0
    %v851 = vsub.s32 0, %v842
    %v852 = vsel %vm850, %v851, %v842
    %v853 = vshrl.u32 %v852, 3
    %v854 = vand.u32 %v852, 7
    %v855 = vsub.s32 0, %v854
    %v856 = vsel %vm850, %v855, %v854
    %vm857 = vcmp.ne.s32.totalorder %v849, 0
    %vm858 = vcmp.ne.s32.totalorder %v856, 0
    %vm859 = vcmp.lt.s32.totalorder %v849, 0
    %vm860 = vcmp.lt.s32.totalorder %v856, 0
    %vm861 = vmand %vm859, %vm857
    %vm862 = vmand %vm860, %vm858
    %v863 = vadd.s32 %v849, 8
    %v864 = vadd.s32 %v856, 8
    %v865 = vsel %vm861, %v863, %v849
    %v866 = vsel %vm862, %v864, %v856
    %vm867 = vcmp.lt.s32.totalorder %v865, 3
    %vm868 = vcmp.lt.s32.totalorder %v866, 3
    %v869 = vmin.f32 %v446, %v834
    %v870 = vmin.f32 %v450, %v838
    %v871 = vmax.f32 %v446, %v834
    %v872 = vmax.f32 %v450, %v838
    %v873 = vsel %vm867, %v869, %v871
    %v874 = vsel %vm868, %v870, %v872
    %875 = vst [vmem:[#allocation8] sm:$0xff] %v873
    %876 = vst [vmem:[#allocation8 + $0x8] sm:$0xff] %v874
    // Predicated region
    $region26: #{tpu_custom_call.1} parent=1 // pred_check
      _
    $region27: #{tpu_custom_call.1} parent=1 // pred_check_branch
      %878 = sbr.rel (0) target = $region29
    $region28: #{tpu_custom_call.1} parent=1 // pred_region
      %880 = vsyncadd [#allocation4], 0
      %s881 = sshll.u32 [#allocation8], 4
      %s882 = int_to_ptr.vmem [resolvable:$true] %s881
      %s883 = sshll.u32 %s3, 4
      %s884 = int_to_ptr.hbm [resolvable:$true] %s883
      %889 = dma.vmem_to_hbm [thread:$0]  %s882, 256, %s884, [#allocation4], 128, 128, 8
    $region29: #{tpu_custom_call.1} parent=1 // pred_fallthru
      _
    // Predicated region
    $region30: #{tpu_custom_call.1} parent=1 // pred_check
      _
    $region31: #{tpu_custom_call.1} parent=1 // pred_check_branch
      %891 = sbr.rel (0) target = $region33
    $region32: #{tpu_custom_call.1} parent=1 // pred_region
      %893 = dma.done [#allocation4], 256
    $region33: #{tpu_custom_call.1} parent=1 // pred_fallthru
      _
    %894 = vsyncpa [#allocation3], 1
    %895 = vsyncpa [#allocation6], 1
    %896 = vsyncpa [#allocation4], 1

</llo_original>
